<compile_context>
chip_gen: v6e
topology: v6e:2x2x1
jax: 0.10.0
libtpu: 0.0.40
codegen_flags: <defaults>
</compile_context>

<pallas_src>
import functools

import jax
import jax.numpy as jnp
from jax.experimental import pallas as pl
from jax.experimental.pallas import tpu as pltpu


def _round_up(x, m):
    return (x + m - 1) // m * m


def patch_embed_kernel(p_ref, w_ref, b_ref, o_ref):
    # p_ref: (tm, K_pad)  w_ref: (K_pad, tn)  b_ref: (1, tn) f32  o_ref: (tm, tn)
    acc = jnp.dot(p_ref[...], w_ref[...], preferred_element_type=jnp.float32)
    o_ref[...] = (acc + b_ref[...]).astype(o_ref.dtype)


def patch_embed(x, weight, bias, patch_size, *, compute_dtype=None,
                out_dtype=None, tm_max=1024,
                vmem_tile_budget=40 * 1024 * 1024):
    """x: (B, C, H, W) NCHW. weight: (E, C, ph, pw). bias: (E,).
    Returns (B, num_patches, E), matching PatchEmbed.forward (norm=Identity).

    compute_dtype=jnp.bfloat16 is recommended on v6e/v7x (f32 accumulation is
    kept); out_dtype=jnp.bfloat16 additionally halves output writeback."""
    B, C, H, W = x.shape
    E = weight.shape[0]
    ph, pw = patch_size
    assert H % ph == 0 and W % pw == 0
    gh, gw = H // ph, W // pw
    num_patches = gh * gw

    out_dtype = x.dtype if out_dtype is None else out_dtype

    # --- im2col (glue). Under jit, allow_input_fusion below lets XLA fuse this
    # transpose + pad into the pallas_call input DMA instead of materializing. ---
    patches = x.reshape(B, C, gh, ph, gw, pw)
    patches = patches.transpose(0, 2, 4, 1, 3, 5)             # (B, gh, gw, C, ph, pw)
    patches = patches.reshape(B * num_patches, C * ph * pw)   # (M, K)
    w2d = weight.reshape(E, C * ph * pw).T                    # (K, E)

    if compute_dtype is not None:
        patches = patches.astype(compute_dtype)
        w2d = w2d.astype(compute_dtype)

    M, K = patches.shape
    elt_in = jnp.dtype(patches.dtype).itemsize
    elt_out = jnp.dtype(out_dtype).itemsize
    sub = 16 if elt_in == 2 else 8            # sublane rounding for the row dim

    # Lane-align contraction and embed dims (zero pad: mathematically a no-op).
    K_pad = _round_up(K, 128)
    E_pad = _round_up(E, 128)

    def fits(tm, tn):
        # double-buffered input tiles + double-buffered output tile + bias
        return (2 * (tm * K_pad + K_pad * tn) * elt_in
                + 2 * tm * tn * elt_out + 2 * tn * 4) <= vmem_tile_budget

    # Prefer keeping the whole embed dim resident: weight DMA'd exactly once.
    tn = E_pad
    if not fits(sub, tn):
        tn = 128
        for cand in (2048, 1024, 512, 256):   # large-E fallback (e.g. v7x budgets)
            if E_pad % cand == 0 and fits(sub, cand):
                tn = cand
                break

    # Row tile: as large as the budget allows, preferring an exact divisor of M
    # so jnp.pad never has to rewrite the full patches array.
    M_r = _round_up(M, sub)
    denom = 2 * K_pad * elt_in + 2 * tn * elt_out
    tm_budget = max(sub, (vmem_tile_budget - 2 * K_pad * tn * elt_in - 2 * tn * 4) // denom)
    tm_budget = max(sub, (tm_budget // sub) * sub)
    tm_cap = max(sub, min(tm_max, M_r, tm_budget))

    best_div = None
    t = sub
    while t <= tm_cap:
        if M % t == 0:
            best_div = t
        t += sub
    if best_div is not None and best_div >= min(256, M):
        tm, M_pad = best_div, M
    else:
        tm = tm_cap
        M_pad = _round_up(M, tm)

    if M_pad != M or K_pad != K:
        patches = jnp.pad(patches, ((0, M_pad - M), (0, K_pad - K)))
    if K_pad != K or E_pad != E:
        w2d = jnp.pad(w2d, ((0, K_pad - K), (0, E_pad - E)))
    if E_pad != E:
        bias = jnp.pad(bias, (0, E_pad - E))
    b2d = bias.reshape(1, E_pad).astype(jnp.float32)

    if tn == E_pad:
        # 1-D grid over rows; weight + bias blocks are grid-invariant (resident).
        grid = (M_pad // tm,)
        in_specs = [
            pl.BlockSpec((tm, K_pad), lambda i: (i, 0)),
            pl.BlockSpec((K_pad, E_pad), lambda i: (0, 0)),
            pl.BlockSpec((1, E_pad), lambda i: (0, 0)),
        ]
        out_specs = pl.BlockSpec((tm, E_pad), lambda i: (i, 0))
        dims = ("parallel",)               # shards row tiles across v7x's 2 TCs
        weight_reads = 1
    else:
        grid = (M_pad // tm, E_pad // tn)
        in_specs = [
            pl.BlockSpec((tm, K_pad), lambda i, j: (i, 0)),
            pl.BlockSpec((K_pad, tn), lambda i, j: (0, j)),
            pl.BlockSpec((1, tn), lambda i, j: (0, j)),
        ]
        out_specs = pl.BlockSpec((tm, tn), lambda i, j: (i, j))
        dims = ("parallel", "parallel")
        weight_reads = M_pad // tm

    vmem_needed = (2 * (tm * K_pad + K_pad * tn) * elt_in
                   + 2 * tm * tn * elt_out + 2 * tn * 4)
    vmem_limit = int(min(max(vmem_needed + (4 << 20), 16 << 20), 48 << 20))

    cost = pl.CostEstimate(
        flops=2 * M_pad * K_pad * E_pad,
        transcendentals=0,
        bytes_accessed=(M_pad * K_pad * elt_in
                        + weight_reads * K_pad * E_pad * elt_in
                        + M_pad * E_pad * elt_out + E_pad * 4),
    )

    out = pl.pallas_call(
        patch_embed_kernel,
        out_shape=jax.ShapeDtypeStruct((M_pad, E_pad), out_dtype),
        grid_spec=pltpu.PrefetchScalarGridSpec(
            num_scalar_prefetch=0,
            grid=grid,
            in_specs=in_specs,
            out_specs=out_specs,
        ),
        compiler_params=pltpu.CompilerParams(
            dimension_semantics=dims,
            vmem_limit_bytes=vmem_limit,
            # Only the patches operand may fuse (pulls im2col transpose/pad
            # into the kernel's input DMA under jit).
            allow_input_fusion=[True, False, False],
        ),
        cost_estimate=cost,
    )(patches, w2d, b2d)

    out = out[:M, :E]
    return out.reshape(B, num_patches, E)


if __name__ == "__main__":
    # Small, consistent shapes: img_size=16, patch_size=4, in_c=4, embed_dim=32
    B, C, H, W = 2, 4, 16, 16
    ph = pw = 4
    E = 32

    key = jax.random.PRNGKey(0)
    kx, kw, kb = jax.random.split(key, 3)
    x = jax.random.normal(kx, (B, C, H, W), dtype=jnp.float32)
    weight = jax.random.normal(kw, (E, C, ph, pw), dtype=jnp.float32) * 0.02
    bias = jax.random.normal(kb, (E,), dtype=jnp.float32) * 0.02

    fwd_f32 = jax.jit(functools.partial(patch_embed, patch_size=(ph, pw)))
    fwd_bf16 = jax.jit(functools.partial(patch_embed, patch_size=(ph, pw),
                                         compute_dtype=jnp.bfloat16))

    out32 = jax.block_until_ready(fwd_f32(x, weight, bias))
    out16 = jax.block_until_ready(fwd_bf16(x, weight, bias))

    # Reference: plain-JAX strided conv (same semantics as nn.Conv2d), then
    # flatten(2).transpose(1, 2); norm is Identity in the spec's default config.
    ref = jax.lax.conv_general_dilated(
        x, weight, window_strides=(ph, pw), padding="VALID",
        dimension_numbers=("NCHW", "OIHW", "NCHW"))
    ref = ref + bias.reshape(1, E, 1, 1)
    ref = ref.reshape(B, E, -1).transpose(0, 2, 1)

    assert out32.shape == (B, (H // ph) * (W // pw), E)
    assert jnp.allclose(out32, ref, atol=1e-4, rtol=1e-4)
    # bf16-input path accumulates in f32; compare with loosened tolerance.
    assert jnp.allclose(out16, ref, atol=2e-2, rtol=2e-2)

    print("KERNEL_OK")
</pallas_src>

<mosaic_0001>
module attributes {stable_mosaic.version = 11 : i64} {
  func.func @patch_embed_kernel(%arg0: i32, %arg1: memref<32x128xf32, #tpu.memory_space<vmem>>, %arg2: memref<128x128xf32, #tpu.memory_space<vmem>>, %arg3: memref<1x128xf32, #tpu.memory_space<vmem>>, %arg4: memref<32x128xf32, #tpu.memory_space<vmem>>) attributes {dimension_semantics = [#tpu.dimension_semantics<parallel>], iteration_bounds = array<i64: 1>, scalar_prefetch = 0 : i64, scratch_operands = 0 : i64, tpu.core_type = #tpu.core_type<tc>, window_params = [{transform_indices = @transform_0, window_bounds = array<i64: 32, 128>}, {pipeline_mode = #tpu.pipeline_mode<synchronous>, transform_indices = @transform_1, window_bounds = array<i64: 128, 128>}, {pipeline_mode = #tpu.pipeline_mode<synchronous>, transform_indices = @transform_2, window_bounds = array<i64: 1, 128>}, {transform_indices = @transform_3, window_bounds = array<i64: 32, 128>}]} {
    %c0 = arith.constant 0 : index
    %c0_0 = arith.constant 0 : index
    %0 = vector.load %arg1[%c0, %c0_0] : memref<32x128xf32, #tpu.memory_space<vmem>>, vector<32x128xf32>
    %c0_1 = arith.constant 0 : index
    %c0_2 = arith.constant 0 : index
    %1 = vector.load %arg2[%c0_1, %c0_2] : memref<128x128xf32, #tpu.memory_space<vmem>>, vector<128x128xf32>
    %cst = arith.constant dense<0.000000e+00> : vector<32x128xf32>
    %2 = tpu.matmul %0, %1, %cst {dimension_numbers = #tpu.dot_dimension_numbers<[1], [0], [0], [1], [0, 0, 1, 1], [], []>} : vector<32x128xf32>, vector<128x128xf32>, vector<32x128xf32> -> vector<32x128xf32>
    %c0_3 = arith.constant 0 : index
    %c0_4 = arith.constant 0 : index
    %3 = vector.load %arg3[%c0_3, %c0_4] : memref<1x128xf32, #tpu.memory_space<vmem>>, vector<1x128xf32>
    %4 = vector.broadcast %3 : vector<1x128xf32> to vector<32x128xf32>
    %5 = arith.addf %2, %4 : vector<32x128xf32>
    %c0_5 = arith.constant 0 : index
    %c0_6 = arith.constant 0 : index
    %6 = vector.load %arg4[%c0_5, %c0_6] : memref<32x128xf32, #tpu.memory_space<vmem>>, vector<32x128xf32>
    tpu.vector_store %arg4[%c0_5, %c0_6], %5 {strides = array<i32>} : memref<32x128xf32, #tpu.memory_space<vmem>>, vector<32x128xf32>,
    return
  }
  func.func @transform_0(%arg0: i32) -> (i32, i32) {
    %c0_i32 = arith.constant 0 : i32
    %c0_i32_0 = arith.constant 0 : i32
    return %arg0, %c0_i32 : i32, i32
  }
  func.func @transform_1(%arg0: i32) -> (i32, i32) {
    %c0_i32 = arith.constant 0 : i32
    %c0_i32_0 = arith.constant 0 : i32
    %c0_i32_1 = arith.constant 0 : i32
    return %c0_i32, %c0_i32_0 : i32, i32
  }
  func.func @transform_2(%arg0: i32) -> (i32, i32) {
    %c0_i32 = arith.constant 0 : i32
    %c0_i32_0 = arith.constant 0 : i32
    %c0_i32_1 = arith.constant 0 : i32
    return %c0_i32, %c0_i32_0 : i32, i32
  }
  func.func @transform_3(%arg0: i32) -> (i32, i32) {
    %c0_i32 = arith.constant 0 : i32
    %c0_i32_0 = arith.constant 0 : i32
    return %arg0, %c0_i32 : i32, i32
  }
}

</mosaic_0001>

<llo_original>
// kernel: patch_embed.2
$region0: #{patch_embed.2}
  #allocation0 [shape = 'u32[]', space=smem, size = 0x4, offset = 0x4, fixed_abs, tag = 'smem constant byte address 0x4 - core index']
  #allocation1 [shape = 'u32[144,128]{1,0:T(1,128)}', space=vmem, size = 0x12000, scoped, tag = 'internal scratch']
  #allocation2 [shape = 'u32[2048]{0}', space=vmem, size = 0x2000, scoped, tag = 'scoped memory for patch_embed.2']
  #allocation3 [shape = 'u32[2048]{0}', space=vmem, size = 0x2000, scoped, tag = 'scoped memory for patch_embed.2']
  #allocation4 [shape = 'u32[2048]{0}', space=vmem, size = 0x2000, scoped, tag = 'scoped memory for patch_embed.2']
  #allocation5 [shape = 'u32[2048]{0}', space=vmem, size = 0x2000, scoped, tag = 'scoped memory for patch_embed.2']
  #allocation6 [shape = 'u32[2048]{0}', space=vmem, size = 0x2000, scoped, tag = 'scoped memory for patch_embed.2']
  %s0 = inlined_call_operand.vmem [shape: f32[128,128], index: 0, kind: input, shape index: {}]
  %s1 = inlined_call_operand.vmem [shape: f32[1,128], index: 1, kind: input, shape index: {}]
  %s2 = inlined_call_operand.vmem [shape: f32[32,64], index: 2, kind: input, shape index: {}]
  %s3 = inlined_call_operand.<no memory space> [shape: f32[], index: 3, kind: input, shape index: {}]
  %s4 = inlined_call_operand.hbm [shape: f32[32,128], index: 4, kind: output, shape index: {}]
  %s5 = sld [smem:[#allocation0]]
  $region22: #{patch_embed.2} parent=0
    _
  %s7 = ssub.s32 1, %s5
  %s8 = scalar_select 0, %s7, %s5
  %v9 = vstv %s3
  $region1: #{patch_embed.2} parent=0
    #allocation7 [shape = 'u8[16384]{0}', space=vmem, size = 0x4000, scoped, tag = 'output window, operand 0, single buffered']
    #allocation8 [shape = 's32[1]{0}', space=sflag, size = 0x4, scoped, tag = 'scoped memory for patch_embed.2']
    #allocation9 [shape = 'u8[16384]{0}', space=vmem, size = 0x4000, dematerialized = true, scoped, tag = 'FusionAdapter Buffer %fusion.1 = f32[32,128]{1,0:T(8,128)} fusion(%param_2.1, %param_3), kind=kLoop, calls=%fused_computation.2.clone, metadata={op_name="jit(patch_embed)/jit(_pad)/pad" stack_frame_id=11}']
    %10 = vsyncpa [#allocation8], 0
    // Predicated region
    $region2: #{patch_embed.2} parent=1 // pred_check
      _
    $region3: #{patch_embed.2} parent=1 // pred_check_branch
      %12 = sbr.rel (0) target = $region5
    $region4: #{patch_embed.2} parent=1 // pred_region
      _
    $region5: #{patch_embed.2} parent=1 // pred_fallthru
      _
    // Predicated region
    $region6: #{patch_embed.2} parent=1 // pred_check
      _
    $region7: #{patch_embed.2} parent=1 // pred_check_branch
      %14 = sbr.rel (0) target = $region9
    $region8: #{patch_embed.2} parent=1 // pred_region
      _
    $region9: #{patch_embed.2} parent=1 // pred_fallthru
      _
    // Predicated region
    $region10: #{patch_embed.2} parent=1 // pred_check
      _
    $region11: #{patch_embed.2} parent=1 // pred_check_branch
      %16 = sbr.rel (0) target = $region13
    $region12: #{patch_embed.2} parent=1 // pred_region
      _
    $region13: #{patch_embed.2} parent=1 // pred_fallthru
      _
    %v17 = vld [vmem:[%s2] sm:$0xff]
    %v18 = vlaneseq
    %v19 = vand.u32 %v18, 127
    %vm21 = vcmp.lt.s32.totalorder %v19, 64
    %v22 = vsel %vm21, %v17, %v9
    %s24 = ssub.s32 256, 1
    %25 = vst [vmem:[#allocation9] sm:%s24] %v22
    %s26 = scalar_lea.vmem %s2, 8
    %v27 = vld [vmem:[%s26] sm:$0xff]
    %v28 = vlaneseq
    %v29 = vand.u32 %v28, 127
    %vm31 = vcmp.lt.s32.totalorder %v29, 64
    %v32 = vsel %vm31, %v27, %v9
    %s33 = scalar_lea.vmem [#allocation9], 8
    %s35 = ssub.s32 256, 1
    %36 = vst [vmem:[%s33] sm:%s35] %v32
    %s37 = scalar_lea.vmem %s2, 16
    %v38 = vld [vmem:[%s37] sm:$0xff]
    %v39 = vlaneseq
    %v40 = vand.u32 %v39, 127
    %vm42 = vcmp.lt.s32.totalorder %v40, 64
    %v43 = vsel %vm42, %v38, %v9
    %s44 = scalar_lea.vmem [#allocation9], 16
    %s46 = ssub.s32 256, 1
    %47 = vst [vmem:[%s44] sm:%s46] %v43
    %s48 = scalar_lea.vmem %s2, 24
    %v49 = vld [vmem:[%s48] sm:$0xff]
    %v50 = vlaneseq
    %v51 = vand.u32 %v50, 127
    %vm53 = vcmp.lt.s32.totalorder %v51, 64
    %v54 = vsel %vm53, %v49, %v9
    %s55 = scalar_lea.vmem [#allocation9], 24
    %s57 = ssub.s32 256, 1
    %58 = vst [vmem:[%s55] sm:%s57] %v54
    %v59 = vld [vmem:[#allocation9] sm:$0xff]
    %v60 = vld [vmem:[#allocation9 + $0x8] sm:$0xff]
    %v61 = vld [vmem:[#allocation9 + $0x10] sm:$0xff]
    %v62 = vld [vmem:[#allocation9 + $0x18] sm:$0xff]
    %v63 = vld [vmem:[%s0] sm:$0xff]
    %v64 = vld [vmem:[%s0 + $0x8] sm:$0xff]
    %v65 = vld [vmem:[%s0 + $0x10] sm:$0xff]
    %v66 = vld [vmem:[%s0 + $0x18] sm:$0xff]
    %v67 = vld [vmem:[%s0 + $0x20] sm:$0xff]
    %v68 = vld [vmem:[%s0 + $0x28] sm:$0xff]
    %v69 = vld [vmem:[%s0 + $0x30] sm:$0xff]
    %v70 = vld [vmem:[%s0 + $0x38] sm:$0xff]
    %v71 = vld [vmem:[%s0 + $0x40] sm:$0xff]
    %v72 = vld [vmem:[%s0 + $0x48] sm:$0xff]
    %v73 = vld [vmem:[%s0 + $0x50] sm:$0xff]
    %v74 = vld [vmem:[%s0 + $0x58] sm:$0xff]
    %v75 = vld [vmem:[%s0 + $0x60] sm:$0xff]
    %v76 = vld [vmem:[%s0 + $0x68] sm:$0xff]
    %v77 = vld [vmem:[%s0 + $0x70] sm:$0xff]
    %v78 = vld [vmem:[%s0 + $0x78] sm:$0xff]
    %v79 = vld [vmem:[%s1] sm:$0x1]
    %v81 = vlaneseq
    %v82 = vshrl.u32 %v81, 7
    %v83 = vsub.s32 0, %v82
    %v84 = vrot.slane %v79, %v83
    %86 = vmatprep.subr.mxu0 0.0
    %87 = vmatpush1.msra.mxu0 %v78
    %88 = vmatprep.subr.mxu0 0.0
    %89 = vmatpush1.msra.mxu0 %v77
    %90 = vmatprep.subr.mxu0 0.0
    %91 = vmatpush1.msra.mxu0 %v76
    %92 = vmatprep.subr.mxu0 0.0
    %93 = vmatpush1.msra.mxu0 %v75
    %94 = vmatprep.subr.mxu0 0.0
    %95 = vmatpush1.msra.mxu0 %v74
    %96 = vmatprep.subr.mxu0 0.0
    %97 = vmatpush1.msra.mxu0 %v73
    %98 = vmatprep.subr.mxu0 0.0
    %99 = vmatpush1.msra.mxu0 %v72
    %100 = vmatprep.subr.mxu0 0.0
    %101 = vmatpush1.msra.mxu0 %v71
    %102 = vmatprep.subr.mxu0 0.0
    %103 = vmatpush1.msra.mxu0 %v70
    %104 = vmatprep.subr.mxu0 0.0
    %105 = vmatpush1.msra.mxu0 %v69
    %106 = vmatprep.subr.mxu0 0.0
    %107 = vmatpush1.msra.mxu0 %v68
    %108 = vmatprep.subr.mxu0 0.0
    %109 = vmatpush1.msra.mxu0 %v67
    %110 = vmatprep.subr.mxu0 0.0
    %111 = vmatpush1.msra.mxu0 %v66
    %112 = vmatprep.subr.mxu0 0.0
    %113 = vmatpush1.msra.mxu0 %v65
    %114 = vmatprep.subr.mxu0 0.0
    %115 = vmatpush1.msra.mxu0 %v64
    %116 = vmatprep.subr.mxu0 0.0
    %117 = vmatpush1.msra.mxu0 %v63
    %118 = vmatprep.subr.mxu0 0.0
    %119 = vmatpush2.msra.mxu0 0.0
    %120 = vmatprep.subr.mxu0 0.0
    %121 = vmatpush2.msra.mxu0 0.0
    %122 = vmatprep.subr.mxu0 0.0
    %123 = vmatpush2.msra.mxu0 0.0
    %124 = vmatprep.subr.mxu0 0.0
    %125 = vmatpush2.msra.mxu0 0.0
    %126 = vmatprep.subr.mxu0 0.0
    %127 = vmatpush2.msra.mxu0 0.0
    %128 = vmatprep.subr.mxu0 0.0
    %129 = vmatpush2.msra.mxu0 0.0
    %130 = vmatprep.subr.mxu0 0.0
    %131 = vmatpush2.msra.mxu0 0.0
    %132 = vmatprep.subr.mxu0 0.0
    %133 = vmatpush2.msra.mxu0 0.0
    %134 = vmatprep.subr.mxu0 0.0
    %135 = vmatpush2.msra.mxu0 0.0
    %136 = vmatprep.subr.mxu0 0.0
    %137 = vmatpush2.msra.mxu0 0.0
    %138 = vmatprep.subr.mxu0 0.0
    %139 = vmatpush2.msra.mxu0 0.0
    %140 = vmatprep.subr.mxu0 0.0
    %141 = vmatpush2.msra.mxu0 0.0
    %142 = vmatprep.subr.mxu0 0.0
    %143 = vmatpush2.msra.mxu0 0.0
    %144 = vmatprep.subr.mxu0 0.0
    %145 = vmatpush2.msra.mxu0 0.0
    %146 = vmatprep.subr.mxu0 0.0
    %147 = vmatpush2.msra.mxu0 0.0
    %148 = vmatprep.subr.mxu0 0.0
    %149 = vmatpush2.msra.mxu0 0.0
    %150 = vmatprep.mubr.f32.mxu0 0.0
    %151 = vmatmul.mubr.f32.gmra.mxu0 %v59
    %v152 = vpop.f32.mrf.mxu0
    %v153 = vadd.f32 %v84, %v152
    %v154 = vpop.f32.mrf.mxu0
    %155 = vmatprep.mubr.f32.mxu0 0.0
    %156 = vmatmul.mubr.f32.gmra.mxu0 %v60
    %v157 = vpop.f32.mrf.mxu0
    %v158 = vadd.f32 %v84, %v157
    %v159 = vpop.f32.mrf.mxu0
    %160 = vmatprep.mubr.f32.mxu0 0.0
    %161 = vmatmul.mubr.f32.gmra.mxu0 %v61
    %v162 = vpop.f32.mrf.mxu0
    %v163 = vadd.f32 %v84, %v162
    %v164 = vpop.f32.mrf.mxu0
    %165 = vmatprep.mubr.f32.mxu0 0.0
    %166 = vmatmul.mubr.f32.gmra.mxu0 %v62
    %v167 = vpop.f32.mrf.mxu0
    %v168 = vadd.f32 %v84, %v167
    %v169 = vpop.f32.mrf.mxu0
    %170 = vdwg.mxu0
    %171 = vst [vmem:[#allocation7] sm:$0xff] %v153
    %172 = vst [vmem:[#allocation7 + $0x8] sm:$0xff] %v158
    %173 = vst [vmem:[#allocation7 + $0x10] sm:$0xff] %v163
    %174 = vst [vmem:[#allocation7 + $0x18] sm:$0xff] %v168
    // Predicated region
    $region14: #{patch_embed.2} parent=1 // pred_check
      _
    $region15: #{patch_embed.2} parent=1 // pred_check_branch
      %176 = sbr.rel (0) target = $region17
    $region16: #{patch_embed.2} parent=1 // pred_region
      %s178 = ssub.s32 512, 512
      %179 = vsyncadd [#allocation8], %s178
      %s180 = sshll.u32 [#allocation7], 4
      %s181 = int_to_ptr.vmem [resolvable:$true] %s180
      %186 = dma.vmem_to_hbm [thread:$0]  %s181, 512, %s4, [#allocation8], 128, 128, 8
    $region17: #{patch_embed.2} parent=1 // pred_fallthru
      _
    // Predicated region
    $region18: #{patch_embed.2} parent=1 // pred_check
      _
    $region19: #{patch_embed.2} parent=1 // pred_check_branch
      %188 = sbr.rel (0) target = $region21
    $region20: #{patch_embed.2} parent=1 // pred_region
      %189 = dma.done [#allocation8], 512
    $region21: #{patch_embed.2} parent=1 // pred_fallthru
      _
    %190 = vsyncpa [#allocation8], 1

</llo_original>
